<compile_context>
chip_gen: v6e
topology: v6e:2x2x1
jax: 0.10.0
libtpu: 0.0.40
codegen_flags: <defaults>
</compile_context>

<pallas_src>
import functools

import jax
import jax.numpy as jnp
from jax.experimental import pallas as pl
from jax.experimental.pallas import tpu as pltpu

EPS_LEN = 1e-9     # clamp(min=1e-9) on the pooled length
EPS_NRM = 1e-12    # F.normalize default eps
MAX_BLOCK_B = 512  # measured sweet spot: >=512 rows ~ 85% of roofline
LANE = 128


def _round_up(x, m):
    return -(-x // m) * m


def _choose_tiling(batch, max_block=MAX_BLOCK_B):
    """Largest sublane-aligned batch tile <= max_block; grid covers padded B."""
    steps = -(-batch // max_block)
    block_b = _round_up(-(-batch // steps), 8)
    return block_b, steps


def _default_pool_dtype():
    """bf16 one-hot build on bf16-VPU chips (v6e/v7x); f32 on v5e (no bf16 VPU)."""
    try:
        kind = jax.devices()[0].device_kind.lower()
    except Exception:
        return jnp.float32
    if "v5 lite" in kind or "v5e" in kind or "v5litepod" in kind:
        return jnp.float32
    return jnp.bfloat16


def two_tower_kernel(q_idx_ref, d_idx_ref, emb_ref, w_ref, b_ref, out_ref, *,
                     pool_dtype):
    q_idx = q_idx_ref[...]                       # (Bb, L) int32
    d_idx = d_idx_ref[...]
    Bb, L = q_idx.shape
    Vp = emb_ref.shape[0] // 2                   # lane-padded vocab
    D2 = emb_ref.shape[1]                        # 2 * embedding_dim
    D = D2 // 2
    H2 = out_ref.shape[-1]                       # 2 * hidden
    H = H2 // 2

    def token_counts(idx):
        # One-hot token counts per vocab id -> (Bb, Vp). Counts <= L are exact
        # in bf16. No pad-mask multiply: embedding row 0 is zero (padding_idx=0)
        # so column-0 counts contribute nothing to the matmul below.
        iota_v = jax.lax.broadcasted_iota(jnp.int32, (Bb, L, Vp), 2)
        return jnp.sum((idx[:, :, None] == iota_v).astype(pool_dtype), axis=1)

    # Lane-dense (Bb, 2Vp) counts. Both halves are 128-lane aligned, so the
    # concatenate is vreg placement only (no cross-lane shuffles).
    pooled = jnp.concatenate([token_counts(q_idx), token_counts(d_idx)], axis=-1)

    # Fused masked embedding sum on the MXU: (Bb,2Vp)@(2Vp,2D) block-diagonal
    # bf16 table -> lane-dense (Bb,2D) f32 (query sum in lanes [0,D), doc in
    # [D,2D)). The bf16 cast of the counts is lossless.
    emb_sum = jnp.dot(pooled.astype(jnp.bfloat16), emb_ref[...],
                      preferred_element_type=jnp.float32)

    # Mean pool. Exact reciprocal ((Bb,1), negligible) for strict parity with
    # the PyTorch clamp-then-divide.
    q_len = jnp.maximum(
        jnp.sum((q_idx != 0).astype(jnp.float32), axis=1, keepdims=True), EPS_LEN)
    d_len = jnp.maximum(
        jnp.sum((d_idx != 0).astype(jnp.float32), axis=1, keepdims=True), EPS_LEN)
    lane_e = jax.lax.broadcasted_iota(jnp.int32, (1, D2), 1)
    inv_len = jnp.where(lane_e < D, 1.0 / q_len, 1.0 / d_len)   # (Bb, 2D)
    avg = emb_sum * inv_len

    # Fused FC: (Bb,2D)@(2D,2H) block-diagonal bf16 weight, f32 accumulate,
    # lane-dense (Bb,2H) result.
    out = jnp.dot(avg.astype(jnp.bfloat16), w_ref[...],
                  preferred_element_type=jnp.float32) + b_ref[...]

    # Per-tower L2 normalize, kept full 128-lane wide: masked lane reduces for
    # the two squared norms, rsqrt on the EUP, lane-selected scale, one
    # full-width multiply and a single unmasked store. No slices, no concat.
    lane_h = jax.lax.broadcasted_iota(jnp.int32, (1, H2), 1)
    is_q = lane_h < H
    sq = out * out
    q_ss = jnp.sum(jnp.where(is_q, sq, 0.0), axis=-1, keepdims=True)
    d_ss = jnp.sum(jnp.where(is_q, 0.0, sq), axis=-1, keepdims=True)
    inv_q = jax.lax.rsqrt(jnp.maximum(q_ss, EPS_NRM * EPS_NRM))
    inv_d = jax.lax.rsqrt(jnp.maximum(d_ss, EPS_NRM * EPS_NRM))
    out_ref[...] = out * jnp.where(is_q, inv_q, inv_d)


def two_tower_forward(query_idxs, doc_idxs, kparams, *, block_b=None,
                      pool_dtype=None):
    B, L = query_idxs.shape
    Vp2, D2 = kparams["emb_cat"].shape           # (2*Vp, 2*D)
    H2 = kparams["w_cat"].shape[1]                # 2 * hidden
    if pool_dtype is None:
        pool_dtype = _default_pool_dtype()

    if block_b is None:
        block_b, steps = _choose_tiling(B)
    else:
        block_b = _round_up(block_b, 8)
        steps = -(-B // block_b)
    b_pad = block_b * steps
    if b_pad != B:
        pad = ((0, b_pad - B), (0, 0))
        query_idxs = jnp.pad(query_idxs, pad)     # pad rows are all-padding (0)
        doc_idxs = jnp.pad(doc_idxs, pad)

    idx_spec = pl.BlockSpec((block_b, L), lambda i: (i, 0))
    emb_spec = pl.BlockSpec((Vp2, D2), lambda i: (0, 0))
    w_spec = pl.BlockSpec((D2, H2), lambda i: (0, 0))
    b_spec = pl.BlockSpec((1, H2), lambda i: (0, 0))
    out_spec = pl.BlockSpec((block_b, H2), lambda i: (i, 0))

    kernel = functools.partial(two_tower_kernel, pool_dtype=pool_dtype)

    out = pl.pallas_call(
        kernel,
        out_shape=jax.ShapeDtypeStruct((b_pad, H2), jnp.float32),
        grid=(steps,),
        in_specs=[idx_spec, idx_spec, emb_spec, w_spec, b_spec],
        out_specs=out_spec,
        compiler_params=pltpu.CompilerParams(
            dimension_semantics=("parallel",),
            vmem_limit_bytes=48 * 1024 * 1024),
    )(query_idxs, doc_idxs,
      kparams["emb_cat"], kparams["w_cat"], kparams["b_cat"])

    H = H2 // 2
    return out[:B, :H], out[:B, H:]


def init_params(key, vocab_size, embedding_dim=64, hidden=64):
    """PyTorch-equivalent parameter init (f32, PyTorch layout)."""
    ks = jax.random.split(key, 6)
    # nn.Embedding default init: N(0, 1); padding_idx row zeroed.
    q_emb = jax.random.normal(ks[0], (vocab_size, embedding_dim), jnp.float32)
    d_emb = jax.random.normal(ks[1], (vocab_size, embedding_dim), jnp.float32)
    q_emb = q_emb.at[0].set(0.0)
    d_emb = d_emb.at[0].set(0.0)
    # nn.Linear default init: U(-1/sqrt(fan_in), 1/sqrt(fan_in)).
    bound = 1.0 / jnp.sqrt(embedding_dim)
    q_w = jax.random.uniform(ks[2], (embedding_dim, hidden), jnp.float32, -bound, bound)
    d_w = jax.random.uniform(ks[3], (embedding_dim, hidden), jnp.float32, -bound, bound)
    q_b = jax.random.uniform(ks[4], (1, hidden), jnp.float32, -bound, bound)
    d_b = jax.random.uniform(ks[5], (1, hidden), jnp.float32, -bound, bound)
    return {"q_emb": q_emb, "d_emb": d_emb,
            "q_w": q_w, "q_b": q_b, "d_w": d_w, "d_b": d_b}


def prepare_params(params):
    """One-time wrapper-side repack: lane-padded bf16 block-diag tables."""
    q_emb = params["q_emb"].astype(jnp.float32)
    d_emb = params["d_emb"].astype(jnp.float32)
    V, D = q_emb.shape
    H = params["q_w"].shape[1]
    # The kernel relies on the padding row being exactly zero (no pad-mask
    # multiply); enforce it here rather than trusting the parameter source.
    q_emb = q_emb.at[0].set(0.0)
    d_emb = d_emb.at[0].set(0.0)
    # Pad vocab to a lane-dense multiple of 128 with zero rows.
    vp = _round_up(V, LANE)
    q_emb = jnp.pad(q_emb, ((0, vp - V), (0, 0)))
    d_emb = jnp.pad(d_emb, ((0, vp - V), (0, 0)))
    # Block-diagonal fused embedding table (bf16). Doubles the table footprint
    # -- fine while V is small; see TODO at top for large vocabularies.
    emb_cat = jnp.zeros((2 * vp, 2 * D), jnp.float32)
    emb_cat = emb_cat.at[:vp, :D].set(q_emb).at[vp:, D:].set(d_emb)
    # Block-diagonal fused FC weight (bf16); f32 accumulation happens in-kernel.
    w_cat = jnp.zeros((2 * D, 2 * H), jnp.float32)
    w_cat = w_cat.at[:D, :H].set(params["q_w"]).at[D:, H:].set(params["d_w"])
    b_cat = jnp.concatenate([params["q_b"], params["d_b"]], axis=-1)
    return {"emb_cat": emb_cat.astype(jnp.bfloat16),
            "w_cat": w_cat.astype(jnp.bfloat16),
            "b_cat": b_cat.astype(jnp.float32)}


def reference_forward(query_idxs, doc_idxs, params):
    """Pure-JAX reference matching the PyTorch forward.

    Uses the same bf16-quantized embedding / FC weights as the kernel
    (intentional accuracy trade-off), so the remaining differences are only
    f32 rounding / summation order and the in-kernel bf16 activation cast.
    """
    def quant(x):
        return x.astype(jnp.bfloat16).astype(jnp.float32)

    def tower(idx, emb, w, b):
        e = emb[idx]                                        # (B, L, D)
        m = (idx != 0).astype(jnp.float32)[..., None]       # (B, L, 1)
        s = jnp.sum(e * m, axis=1)
        n = jnp.maximum(jnp.sum(m, axis=1), EPS_LEN)
        avg = s / n
        out = avg @ w + b
        norm = jnp.linalg.norm(out, axis=1, keepdims=True)
        return out / jnp.maximum(norm, EPS_NRM)

    q_emb = quant(params["q_emb"].at[0].set(0.0))
    d_emb = quant(params["d_emb"].at[0].set(0.0))
    return (tower(query_idxs, q_emb, quant(params["q_w"]), params["q_b"]),
            tower(doc_idxs, d_emb, quant(params["d_w"]), params["d_b"]))


if __name__ == "__main__":
    key = jax.random.PRNGKey(0)
    # Small shapes consistent with the module; V not a multiple of 128 and B not
    # a multiple of 8 so both wrapper-side padding paths are exercised.
    B, L, V, D, H = 6, 8, 100, 64, 64

    k_p, k_q, k_d, k_ql, k_dl = jax.random.split(key, 5)
    params = init_params(k_p, vocab_size=V, embedding_dim=D, hidden=H)
    kparams = prepare_params(params)

    # Random token ids in [1, V); pad the tail of each sequence with zeros.
    query_idxs = jax.random.randint(k_q, (B, L), 1, V, dtype=jnp.int32)
    doc_idxs = jax.random.randint(k_d, (B, L), 1, V, dtype=jnp.int32)
    q_lens = jax.random.randint(k_ql, (B,), 2, L + 1, dtype=jnp.int32)
    d_lens = jax.random.randint(k_dl, (B,), 2, L + 1, dtype=jnp.int32)
    pos = jnp.arange(L)[None, :]
    query_idxs = jnp.where(pos < q_lens[:, None], query_idxs, 0)
    doc_idxs = jnp.where(pos < d_lens[:, None], doc_idxs, 0)

    q_norm, d_norm = two_tower_forward(query_idxs, doc_idxs, kparams)
    jax.block_until_ready((q_norm, d_norm))

    q_ref, d_ref = reference_forward(query_idxs, doc_idxs, params)
    assert q_norm.shape == (B, H) and d_norm.shape == (B, H)
    # Tolerance covers the in-kernel bf16 activation cast before the FC matmul
    # (outputs are L2-normalized, so atol is meaningful; observed error ~1e-4).
    assert jnp.allclose(q_norm, q_ref, atol=2e-3), "query tower mismatch"
    assert jnp.allclose(d_norm, d_ref, atol=2e-3), "doc tower mismatch"
    # Sanity: unit-norm rows.
    assert jnp.allclose(jnp.linalg.norm(q_norm, axis=1), 1.0, atol=1e-3)
    assert jnp.allclose(jnp.linalg.norm(d_norm, axis=1), 1.0, atol=1e-3)

    print("KERNEL_OK")
</pallas_src>

<mosaic_0001>
module attributes {stable_mosaic.version = 11 : i64} {
  func.func @two_tower_kernel(%arg0: i32, %arg1: memref<8x8xi32, #tpu.memory_space<vmem>>, %arg2: memref<8x8xi32, #tpu.memory_space<vmem>>, %arg3: memref<256x128xbf16, #tpu.memory_space<vmem>>, %arg4: memref<128x128xbf16, #tpu.memory_space<vmem>>, %arg5: memref<1x128xf32, #tpu.memory_space<vmem>>, %arg6: memref<8x128xf32, #tpu.memory_space<vmem>>) attributes {dimension_semantics = [#tpu.dimension_semantics<parallel>], iteration_bounds = array<i64: 1>, scalar_prefetch = 0 : i64, scratch_operands = 0 : i64, tpu.core_type = #tpu.core_type<tc>, window_params = [{transform_indices = @transform_0, window_bounds = array<i64: 8, 8>}, {transform_indices = @transform_1, window_bounds = array<i64: 8, 8>}, {pipeline_mode = #tpu.pipeline_mode<synchronous>, transform_indices = @transform_2, window_bounds = array<i64: 256, 128>}, {pipeline_mode = #tpu.pipeline_mode<synchronous>, transform_indices = @transform_3, window_bounds = array<i64: 128, 128>}, {pipeline_mode = #tpu.pipeline_mode<synchronous>, transform_indices = @transform_4, window_bounds = array<i64: 1, 128>}, {transform_indices = @transform_5, window_bounds = array<i64: 8, 128>}]} {
    %c0 = arith.constant 0 : index
    %c0_0 = arith.constant 0 : index
    %0 = vector.load %arg1[%c0, %c0_0] : memref<8x8xi32, #tpu.memory_space<vmem>>, vector<8x8xi32>
    %c0_1 = arith.constant 0 : index
    %c0_2 = arith.constant 0 : index
    %1 = vector.load %arg2[%c0_1, %c0_2] : memref<8x8xi32, #tpu.memory_space<vmem>>, vector<8x8xi32>
    %2 = tpu.iota {dimensions = array<i32: 2>} : vector<8x8x128xi32>
    %3 = vector.shape_cast %0 : vector<8x8xi32> to vector<8x8x1xi32>
    %4 = vector.broadcast %3 : vector<8x8x1xi32> to vector<8x8x128xi32>
    %5 = arith.cmpi eq, %4, %2 : vector<8x8x128xi32>
    %6 = arith.extui %5 : vector<8x8x128xi1> to vector<8x8x128xi32>
    %7 = arith.sitofp %6 : vector<8x8x128xi32> to vector<8x8x128xf32>
    %8 = arith.truncf %7 : vector<8x8x128xf32> to vector<8x8x128xbf16>
    %9 = arith.extf %8 : vector<8x8x128xbf16> to vector<8x8x128xf32>
    %cst = arith.constant dense<0.000000e+00> : vector<8x128xf32>
    %10 = vector.multi_reduction <add>, %9, %cst [1] : vector<8x8x128xf32> to vector<8x128xf32>
    %11 = arith.truncf %10 : vector<8x128xf32> to vector<8x128xbf16>
    %12 = tpu.iota {dimensions = array<i32: 2>} : vector<8x8x128xi32>
    %13 = vector.shape_cast %1 : vector<8x8xi32> to vector<8x8x1xi32>
    %14 = vector.broadcast %13 : vector<8x8x1xi32> to vector<8x8x128xi32>
    %15 = arith.cmpi eq, %14, %12 : vector<8x8x128xi32>
    %16 = arith.extui %15 : vector<8x8x128xi1> to vector<8x8x128xi32>
    %17 = arith.sitofp %16 : vector<8x8x128xi32> to vector<8x8x128xf32>
    %18 = arith.truncf %17 : vector<8x8x128xf32> to vector<8x8x128xbf16>
    %19 = arith.extf %18 : vector<8x8x128xbf16> to vector<8x8x128xf32>
    %cst_3 = arith.constant dense<0.000000e+00> : vector<8x128xf32>
    %20 = vector.multi_reduction <add>, %19, %cst_3 [1] : vector<8x8x128xf32> to vector<8x128xf32>
    %21 = arith.truncf %20 : vector<8x128xf32> to vector<8x128xbf16>
    %22 = tpu.concatenate %11, %21 in 1 : vector<8x128xbf16>, vector<8x128xbf16> -> vector<8x256xbf16>
    %c0_4 = arith.constant 0 : index
    %c0_5 = arith.constant 0 : index
    %23 = vector.load %arg3[%c0_4, %c0_5] : memref<256x128xbf16, #tpu.memory_space<vmem>>, vector<256x128xbf16>
    %cst_6 = arith.constant dense<0.000000e+00> : vector<8x128xf32>
    %24 = tpu.matmul %22, %23, %cst_6 {dimension_numbers = #tpu.dot_dimension_numbers<[1], [0], [0], [1], [0, 0, 1, 1], [], []>} : vector<8x256xbf16>, vector<256x128xbf16>, vector<8x128xf32> -> vector<8x128xf32>
    %c0_i32 = arith.constant 0 : i32
    %25 = vector.broadcast %c0_i32 : i32 to vector<8x8xi32>
    %26 = arith.cmpi ne, %0, %25 : vector<8x8xi32>
    %27 = arith.extui %26 : vector<8x8xi1> to vector<8x8xi32>
    %28 = arith.sitofp %27 : vector<8x8xi32> to vector<8x8xf32>
    %cst_7 = arith.constant dense<0.000000e+00> : vector<8xf32>
    %29 = vector.multi_reduction <add>, %28, %cst_7 [1] : vector<8x8xf32> to vector<8xf32>
    %30 = vector.shape_cast %29 : vector<8xf32> to vector<8x1xf32>
    %cst_8 = arith.constant 9.99999971E-10 : f32
    %31 = vector.broadcast %cst_8 : f32 to vector<8x1xf32>
    %32 = arith.maximumf %30, %31 : vector<8x1xf32>
    %c0_i32_9 = arith.constant 0 : i32
    %33 = vector.broadcast %c0_i32_9 : i32 to vector<8x8xi32>
    %34 = arith.cmpi ne, %1, %33 : vector<8x8xi32>
    %35 = arith.extui %34 : vector<8x8xi1> to vector<8x8xi32>
    %36 = arith.sitofp %35 : vector<8x8xi32> to vector<8x8xf32>
    %cst_10 = arith.constant dense<0.000000e+00> : vector<8xf32>
    %37 = vector.multi_reduction <add>, %36, %cst_10 [1] : vector<8x8xf32> to vector<8xf32>
    %38 = vector.shape_cast %37 : vector<8xf32> to vector<8x1xf32>
    %cst_11 = arith.constant 9.99999971E-10 : f32
    %39 = vector.broadcast %cst_11 : f32 to vector<8x1xf32>
    %40 = arith.maximumf %38, %39 : vector<8x1xf32>
    %41 = tpu.iota {dimensions = array<i32: 1>} : vector<1x128xi32>
    %c64_i32 = arith.constant 64 : i32
    %42 = vector.broadcast %c64_i32 : i32 to vector<1x128xi32>
    %43 = arith.cmpi slt, %41, %42 : vector<1x128xi32>
    %cst_12 = arith.constant 1.000000e+00 : f32
    %44 = vector.broadcast %cst_12 : f32 to vector<8x1xf32>
    %45 = arith.divf %44, %32 : vector<8x1xf32>
    %cst_13 = arith.constant 1.000000e+00 : f32
    %46 = vector.broadcast %cst_13 : f32 to vector<8x1xf32>
    %47 = arith.divf %46, %40 : vector<8x1xf32>
    %48 = vector.shape_cast %43 : vector<1x128xi1> to vector<1x128xi1>
    %49 = vector.broadcast %48 : vector<1x128xi1> to vector<8x128xi1>
    %50 = vector.shape_cast %45 : vector<8x1xf32> to vector<8x1xf32>
    %51 = vector.broadcast %50 : vector<8x1xf32> to vector<8x128xf32>
    %52 = vector.shape_cast %47 : vector<8x1xf32> to vector<8x1xf32>
    %53 = vector.broadcast %52 : vector<8x1xf32> to vector<8x128xf32>
    %54 = arith.select %49, %51, %53 : vector<8x128xi1>, vector<8x128xf32>
    %55 = arith.mulf %24, %54 : vector<8x128xf32>
    %56 = arith.truncf %55 : vector<8x128xf32> to vector<8x128xbf16>
    %c0_14 = arith.constant 0 : index
    %c0_15 = arith.constant 0 : index
    %57 = vector.load %arg4[%c0_14, %c0_15] : memref<128x128xbf16, #tpu.memory_space<vmem>>, vector<128x128xbf16>
    %cst_16 = arith.constant dense<0.000000e+00> : vector<8x128xf32>
    %58 = tpu.matmul %56, %57, %cst_16 {dimension_numbers = #tpu.dot_dimension_numbers<[1], [0], [0], [1], [0, 0, 1, 1], [], []>} : vector<8x128xbf16>, vector<128x128xbf16>, vector<8x128xf32> -> vector<8x128xf32>
    %c0_17 = arith.constant 0 : index
    %c0_18 = arith.constant 0 : index
    %59 = vector.load %arg5[%c0_17, %c0_18] : memref<1x128xf32, #tpu.memory_space<vmem>>, vector<1x128xf32>
    %60 = vector.broadcast %59 : vector<1x128xf32> to vector<8x128xf32>
    %61 = arith.addf %58, %60 : vector<8x128xf32>
    %62 = tpu.iota {dimensions = array<i32: 1>} : vector<1x128xi32>
    %c64_i32_19 = arith.constant 64 : i32
    %63 = vector.broadcast %c64_i32_19 : i32 to vector<1x128xi32>
    %64 = arith.cmpi slt, %62, %63 : vector<1x128xi32>
    %65 = arith.mulf %61, %61 : vector<8x128xf32>
    %cst_20 = arith.constant 0.000000e+00 : f32
    %66 = vector.shape_cast %64 : vector<1x128xi1> to vector<1x128xi1>
    %67 = vector.broadcast %66 : vector<1x128xi1> to vector<8x128xi1>
    %68 = vector.broadcast %cst_20 : f32 to vector<8x128xf32>
    %69 = arith.select %67, %65, %68 : vector<8x128xi1>, vector<8x128xf32>
    %cst_21 = arith.constant dense<0.000000e+00> : vector<8xf32>
    %70 = vector.multi_reduction <add>, %69, %cst_21 [1] : vector<8x128xf32> to vector<8xf32>
    %71 = vector.shape_cast %70 : vector<8xf32> to vector<8x1xf32>
    %cst_22 = arith.constant 0.000000e+00 : f32
    %72 = vector.shape_cast %64 : vector<1x128xi1> to vector<1x128xi1>
    %73 = vector.broadcast %72 : vector<1x128xi1> to vector<8x128xi1>
    %74 = vector.broadcast %cst_22 : f32 to vector<8x128xf32>
    %75 = arith.select %73, %74, %65 : vector<8x128xi1>, vector<8x128xf32>
    %cst_23 = arith.constant dense<0.000000e+00> : vector<8xf32>
    %76 = vector.multi_reduction <add>, %75, %cst_23 [1] : vector<8x128xf32> to vector<8xf32>
    %77 = vector.shape_cast %76 : vector<8xf32> to vector<8x1xf32>
    %cst_24 = arith.constant 1.000000e-24 : f32
    %78 = vector.broadcast %cst_24 : f32 to vector<8x1xf32>
    %79 = arith.maximumf %71, %78 : vector<8x1xf32>
    %80 = math.rsqrt %79 : vector<8x1xf32>
    %cst_25 = arith.constant 1.000000e-24 : f32
    %81 = vector.broadcast %cst_25 : f32 to vector<8x1xf32>
    %82 = arith.maximumf %77, %81 : vector<8x1xf32>
    %83 = math.rsqrt %82 : vector<8x1xf32>
    %84 = vector.shape_cast %64 : vector<1x128xi1> to vector<1x128xi1>
    %85 = vector.broadcast %84 : vector<1x128xi1> to vector<8x128xi1>
    %86 = vector.shape_cast %80 : vector<8x1xf32> to vector<8x1xf32>
    %87 = vector.broadcast %86 : vector<8x1xf32> to vector<8x128xf32>
    %88 = vector.shape_cast %83 : vector<8x1xf32> to vector<8x1xf32>
    %89 = vector.broadcast %88 : vector<8x1xf32> to vector<8x128xf32>
    %90 = arith.select %85, %87, %89 : vector<8x128xi1>, vector<8x128xf32>
    %91 = arith.mulf %61, %90 : vector<8x128xf32>
    %c0_26 = arith.constant 0 : index
    %c0_27 = arith.constant 0 : index
    %92 = vector.load %arg6[%c0_26, %c0_27] : memref<8x128xf32, #tpu.memory_space<vmem>>, vector<8x128xf32>
    tpu.vector_store %arg6[%c0_26, %c0_27], %91 {strides = array<i32>} : memref<8x128xf32, #tpu.memory_space<vmem>>, vector<8x128xf32>,
    return
  }
  func.func @transform_0(%arg0: i32) -> (i32, i32) {
    %c0_i32 = arith.constant 0 : i32
    %c0_i32_0 = arith.constant 0 : i32
    return %arg0, %c0_i32 : i32, i32
  }
  func.func @transform_1(%arg0: i32) -> (i32, i32) {
    %c0_i32 = arith.constant 0 : i32
    %c0_i32_0 = arith.constant 0 : i32
    return %arg0, %c0_i32 : i32, i32
  }
  func.func @transform_2(%arg0: i32) -> (i32, i32) {
    %c0_i32 = arith.constant 0 : i32
    %c0_i32_0 = arith.constant 0 : i32
    %c0_i32_1 = arith.constant 0 : i32
    return %c0_i32, %c0_i32_0 : i32, i32
  }
  func.func @transform_3(%arg0: i32) -> (i32, i32) {
    %c0_i32 = arith.constant 0 : i32
    %c0_i32_0 = arith.constant 0 : i32
    %c0_i32_1 = arith.constant 0 : i32
    return %c0_i32, %c0_i32_0 : i32, i32
  }
  func.func @transform_4(%arg0: i32) -> (i32, i32) {
    %c0_i32 = arith.constant 0 : i32
    %c0_i32_0 = arith.constant 0 : i32
    %c0_i32_1 = arith.constant 0 : i32
    return %c0_i32, %c0_i32_0 : i32, i32
  }
  func.func @transform_5(%arg0: i32) -> (i32, i32) {
    %c0_i32 = arith.constant 0 : i32
    %c0_i32_0 = arith.constant 0 : i32
    return %arg0, %c0_i32 : i32, i32
  }
}

</mosaic_0001>

<llo_original>
// kernel: tpu_custom_call.1
$region0: #{tpu_custom_call.1}
  #allocation0 [shape = 'u32[]', space=smem, size = 0x4, offset = 0x4, fixed_abs, tag = 'smem constant byte address 0x4 - core index']
  #allocation1 [shape = 'u32[144,128]{1,0:T(1,128)}', space=vmem, size = 0x12000, scoped, tag = 'internal scratch']
  %s0 = inlined_call_operand.hbm [shape: s32[8,8], index: 0, kind: input, shape index: {}]
  %s1 = inlined_call_operand.hbm [shape: s32[8,8], index: 1, kind: input, shape index: {}]
  %s2 = inlined_call_operand.hbm [shape: bf16[256,128], index: 2, kind: input, shape index: {}]
  %s3 = inlined_call_operand.hbm [shape: bf16[128,128], index: 3, kind: input, shape index: {}]
  %s4 = inlined_call_operand.vmem [shape: f32[1,128], index: 4, kind: input, shape index: {}]
  %s5 = inlined_call_operand.hbm [shape: f32[8,128], index: 5, kind: output, shape index: {}]
  %s6 = sld [smem:[#allocation0]]
  $region46: #{tpu_custom_call.1} parent=0
    _
  %s8 = ssub.s32 1, %s6
  %s9 = scalar_select 0, %s8, %s6
  $region1: #{tpu_custom_call.1} parent=0
    #allocation2 [shape = 'u8[4096]{0}', space=vmem, size = 0x1000, scoped, tag = 'input window, operand 0, single buffered']
    #allocation3 [shape = 's32[1]{0}', space=sflag, size = 0x4, scoped, tag = 'scoped memory for tpu_custom_call.1']
    #allocation4 [shape = 's32[1]{0}', space=sflag, size = 0x4, scoped, tag = 'scoped memory for tpu_custom_call.1']
    #allocation5 [shape = 'u8[4096]{0}', space=vmem, size = 0x1000, scoped, tag = 'input window, operand 1, single buffered']
    #allocation6 [shape = 's32[1]{0}', space=sflag, size = 0x4, scoped, tag = 'scoped memory for tpu_custom_call.1']
    #allocation7 [shape = 'u8[65536]{0}', space=vmem, size = 0x10000, scoped, tag = 'input window, operand 2, single buffered']
    #allocation8 [shape = 'u8[32768]{0}', space=vmem, size = 0x8000, scoped, tag = 'input window, operand 3, single buffered']
    #allocation9 [shape = 's32[1]{0}', space=sflag, size = 0x4, scoped, tag = 'scoped memory for tpu_custom_call.1']
    #allocation10 [shape = 'u8[4096]{0}', space=vmem, size = 0x1000, scoped, tag = 'output window, operand 0, single buffered']
    %10 = vsyncpa [#allocation3], 0
    %11 = vsyncpa [#allocation6], 0
    %12 = vsyncpa [#allocation9], 0
    %13 = vsyncpa [#allocation4], 0
    // Predicated region
    $region2: #{tpu_custom_call.1} parent=1 // pred_check
      _
    $region3: #{tpu_custom_call.1} parent=1 // pred_check_branch
      %15 = sbr.rel (0) target = $region5
    $region4: #{tpu_custom_call.1} parent=1 // pred_region
      %s17 = ssub.s32 128, 128
      %18 = vsyncadd [#allocation3], %s17
      %s20 = sshll.u32 [#allocation2], 4
      %s21 = int_to_ptr.vmem [resolvable:$true] %s20
      %23 = dma.hbm_to_vmem [thread:$0]  %s0, 128, %s21, [#allocation3]
    $region5: #{tpu_custom_call.1} parent=1 // pred_fallthru
      _
    // Predicated region
    $region6: #{tpu_custom_call.1} parent=1 // pred_check
      _
    $region7: #{tpu_custom_call.1} parent=1 // pred_check_branch
      %25 = sbr.rel (0) target = $region9
    $region8: #{tpu_custom_call.1} parent=1 // pred_region
      %s27 = ssub.s32 128, 128
      %28 = vsyncadd [#allocation6], %s27
      %s30 = sshll.u32 [#allocation5], 4
      %s31 = int_to_ptr.vmem [resolvable:$true] %s30
      %33 = dma.hbm_to_vmem [thread:$0]  %s1, 128, %s31, [#allocation6]
    $region9: #{tpu_custom_call.1} parent=1 // pred_fallthru
      _
    // Predicated region
    $region10: #{tpu_custom_call.1} parent=1 // pred_check
      _
    $region11: #{tpu_custom_call.1} parent=1 // pred_check_branch
      %35 = sbr.rel (0) target = $region13
    $region12: #{tpu_custom_call.1} parent=1 // pred_region
      %s37 = ssub.s32 2048, 2048
      %38 = vsyncadd [#allocation6], %s37
      %s39 = sshll.u32 [#allocation7], 4
      %s40 = int_to_ptr.vmem [resolvable:$true] %s39
      %45 = dma.hbm_to_vmem [thread:$0]  %s2, 2048, %s40, [#allocation6], 64, 64, 4
    $region13: #{tpu_custom_call.1} parent=1 // pred_fallthru
      _
    // Predicated region
    $region14: #{tpu_custom_call.1} parent=1 // pred_check
      _
    $region15: #{tpu_custom_call.1} parent=1 // pred_check_branch
      %47 = sbr.rel (0) target = $region17
    $region16: #{tpu_custom_call.1} parent=1 // pred_region
      %s49 = ssub.s32 1024, 1024
      %50 = vsyncadd [#allocation9], %s49
      %s51 = sshll.u32 [#allocation8], 4
      %s52 = int_to_ptr.vmem [resolvable:$true] %s51
      %57 = dma.hbm_to_vmem [thread:$0]  %s3, 1024, %s52, [#allocation9], 64, 64, 4
    $region17: #{tpu_custom_call.1} parent=1 // pred_fallthru
      _
    // Predicated region
    $region18: #{tpu_custom_call.1} parent=1 // pred_check
      _
    $region19: #{tpu_custom_call.1} parent=1 // pred_check_branch
      %59 = sbr.rel (0) target = $region21
    $region20: #{tpu_custom_call.1} parent=1 // pred_region
      _
    $region21: #{tpu_custom_call.1} parent=1 // pred_fallthru
      _
    // Predicated region
    $region22: #{tpu_custom_call.1} parent=1 // pred_check
      _
    $region23: #{tpu_custom_call.1} parent=1 // pred_check_branch
      %61 = sbr.rel (0) target = $region25
    $region24: #{tpu_custom_call.1} parent=1 // pred_region
      %62 = dma.done [#allocation3], 128
    $region25: #{tpu_custom_call.1} parent=1 // pred_fallthru
      _
    // Predicated region
    $region26: #{tpu_custom_call.1} parent=1 // pred_check
      _
    $region27: #{tpu_custom_call.1} parent=1 // pred_check_branch
      %64 = sbr.rel (0) target = $region29
    $region28: #{tpu_custom_call.1} parent=1 // pred_region
      %65 = dma.done [#allocation6], 128
    $region29: #{tpu_custom_call.1} parent=1 // pred_fallthru
      _
    // Predicated region
    $region30: #{tpu_custom_call.1} parent=1 // pred_check
      _
    $region31: #{tpu_custom_call.1} parent=1 // pred_check_branch
      %67 = sbr.rel (0) target = $region33
    $region32: #{tpu_custom_call.1} parent=1 // pred_region
      %68 = dma.done [#allocation6], 2048
    $region33: #{tpu_custom_call.1} parent=1 // pred_fallthru
      _
    // Predicated region
    $region34: #{tpu_custom_call.1} parent=1 // pred_check
      _
    $region35: #{tpu_custom_call.1} parent=1 // pred_check_branch
      %70 = sbr.rel (0) target = $region37
    $region36: #{tpu_custom_call.1} parent=1 // pred_region
      %71 = dma.done [#allocation9], 1024
    $region37: #{tpu_custom_call.1} parent=1 // pred_fallthru
      _
    %v73 = vld [vmem:[#allocation2] sm:$0xff]
    %v74 = vld [vmem:[#allocation5] sm:$0xff]
    %v75 = vlaneseq
    %v76 = vand.u32 %v75, 127
    %v77 = vlaneseq
    %v78 = vshrl.u32 %v77, 7
    %v79 = vsub.s32 0, %v78
    %v80 = vrot.slane %v73, %v79
    %82 = vbcast.lane.b32.xlu0 %v80, 256
    %v83 = vpop.permute.xlu0 %82
    %v84 = vlaneseq
    %v85 = vshrl.u32 %v84, 7
    %v86 = vsub.s32 1, %v85
    %v87 = vrot.slane %v73, %v86
    %89 = vbcast.lane.b32.xlu0 %v87, 256
    %v90 = vpop.permute.xlu0 %89
    %v91 = vlaneseq
    %v92 = vshrl.u32 %v91, 7
    %v93 = vsub.s32 2, %v92
    %v94 = vrot.slane %v73, %v93
    %96 = vbcast.lane.b32.xlu0 %v94, 256
    %v97 = vpop.permute.xlu0 %96
    %v98 = vlaneseq
    %v99 = vshrl.u32 %v98, 7
    %v100 = vsub.s32 3, %v99
    %v101 = vrot.slane %v73, %v100
    %103 = vbcast.lane.b32.xlu0 %v101, 256
    %v104 = vpop.permute.xlu0 %103
    %v105 = vlaneseq
    %v106 = vshrl.u32 %v105, 7
    %v107 = vsub.s32 4, %v106
    %v108 = vrot.slane %v73, %v107
    %110 = vbcast.lane.b32.xlu0 %v108, 256
    %v111 = vpop.permute.xlu0 %110
    %v112 = vlaneseq
    %v113 = vshrl.u32 %v112, 7
    %v114 = vsub.s32 5, %v113
    %v115 = vrot.slane %v73, %v114
    %117 = vbcast.lane.b32.xlu0 %v115, 256
    %v118 = vpop.permute.xlu0 %117
    %v119 = vlaneseq
    %v120 = vshrl.u32 %v119, 7
    %v121 = vsub.s32 6, %v120
    %v122 = vrot.slane %v73, %v121
    %124 = vbcast.lane.b32.xlu0 %v122, 256
    %v125 = vpop.permute.xlu0 %124
    %v126 = vlaneseq
    %v127 = vshrl.u32 %v126, 7
    %v128 = vsub.s32 7, %v127
    %v129 = vrot.slane %v73, %v128
    %131 = vbcast.lane.b32.xlu0 %v129, 256
    %v132 = vpop.permute.xlu0 %131
    %vm133 = vcmp.eq.s32.totalorder %v83, %v76
    %vm134 = vcmp.eq.s32.totalorder %v90, %v76
    %vm135 = vcmp.eq.s32.totalorder %v97, %v76
    %vm136 = vcmp.eq.s32.totalorder %v104, %v76
    %vm137 = vcmp.eq.s32.totalorder %v111, %v76
    %vm138 = vcmp.eq.s32.totalorder %v118, %v76
    %vm139 = vcmp.eq.s32.totalorder %v125, %v76
    %vm140 = vcmp.eq.s32.totalorder %v132, %v76
    %v141 = vsel %vm133, 1, 0
    %v142 = vsel %vm134, 1, 0
    %v143 = vsel %vm135, 1, 0
    %v144 = vsel %vm136, 1, 0
    %v145 = vsel %vm137, 1, 0
    %v146 = vsel %vm138, 1, 0
    %v147 = vsel %vm139, 1, 0
    %v148 = vsel %vm140, 1, 0
    %v149 = vcvt.s32.f32 %v141
    %v150 = vcvt.s32.f32 %v142
    %v151 = vcvt.s32.f32 %v143
    %v152 = vcvt.s32.f32 %v144
    %v153 = vcvt.s32.f32 %v145
    %v154 = vcvt.s32.f32 %v146
    %v155 = vcvt.s32.f32 %v147
    %v156 = vcvt.s32.f32 %v148
    %v157 = vpack.c.bf16 %v149, %v149
    %v158 = vpack.c.bf16 %v150, %v150
    %v159 = vpack.c.bf16 %v151, %v151
    %v160 = vpack.c.bf16 %v152, %v152
    %v161 = vpack.c.bf16 %v153, %v153
    %v162 = vpack.c.bf16 %v154, %v154
    %v163 = vpack.c.bf16 %v155, %v155
    %v164 = vpack.c.bf16 %v156, %v156
    %v165 = vunpack.c.l.bf16 %v157
    %v166 = vunpack.c.l.bf16 %v158
    %v167 = vunpack.c.l.bf16 %v159
    %v168 = vunpack.c.l.bf16 %v160
    %v169 = vunpack.c.l.bf16 %v161
    %v170 = vunpack.c.l.bf16 %v162
    %v171 = vunpack.c.l.bf16 %v163
    %v172 = vunpack.c.l.bf16 %v164
    %v173 = vrot.slane %v165, 4
    %v174 = vadd.f32 %v165, %v173
    %v175 = vrot.slane %v174, 2
    %v176 = vadd.f32 %v174, %v175
    %v177 = vrot.slane %v176, 1
    %v178 = vadd.f32 %v176, %v177
    %v179 = vrot.slane %v166, 4
    %v180 = vadd.f32 %v166, %v179
    %v181 = vrot.slane %v180, 2
    %v182 = vadd.f32 %v180, %v181
    %v183 = vrot.slane %v182, 1
    %v184 = vadd.f32 %v182, %v183
    %v185 = vrot.slane %v167, 4
    %v186 = vadd.f32 %v167, %v185
    %v187 = vrot.slane %v186, 2
    %v188 = vadd.f32 %v186, %v187
    %v189 = vrot.slane %v188, 1
    %v190 = vadd.f32 %v188, %v189
    %v191 = vrot.slane %v168, 4
    %v192 = vadd.f32 %v168, %v191
    %v193 = vrot.slane %v192, 2
    %v194 = vadd.f32 %v192, %v193
    %v195 = vrot.slane %v194, 1
    %v196 = vadd.f32 %v194, %v195
    %v197 = vrot.slane %v169, 4
    %v198 = vadd.f32 %v169, %v197
    %v199 = vrot.slane %v198, 2
    %v200 = vadd.f32 %v198, %v199
    %v201 = vrot.slane %v200, 1
    %v202 = vadd.f32 %v200, %v201
    %v203 = vrot.slane %v170, 4
    %v204 = vadd.f32 %v170, %v203
    %v205 = vrot.slane %v204, 2
    %v206 = vadd.f32 %v204, %v205
    %v207 = vrot.slane %v206, 1
    %v208 = vadd.f32 %v206, %v207
    %v209 = vrot.slane %v171, 4
    %v210 = vadd.f32 %v171, %v209
    %v211 = vrot.slane %v210, 2
    %v212 = vadd.f32 %v210, %v211
    %v213 = vrot.slane %v212, 1
    %v214 = vadd.f32 %v212, %v213
    %v215 = vrot.slane %v172, 4
    %v216 = vadd.f32 %v172, %v215
    %v217 = vrot.slane %v216, 2
    %v218 = vadd.f32 %v216, %v217
    %v219 = vrot.slane %v218, 1
    %v220 = vadd.f32 %v218, %v219
    %v221 = vpack.c.bf16 %v178, %v178
    %v222 = vpack.c.bf16 %v184, %v184
    %v223 = vpack.c.bf16 %v190, %v190
    %v224 = vpack.c.bf16 %v196, %v196
    %v225 = vpack.c.bf16 %v202, %v202
    %v226 = vpack.c.bf16 %v208, %v208
    %v227 = vpack.c.bf16 %v214, %v214
    %v228 = vpack.c.bf16 %v220, %v220
    %v229 = vlaneseq
    %v230 = vshrl.u32 %v229, 7
    %v231 = vsub.s32 0, %v230
    %v232 = vrot.slane %v74, %v231
    %234 = vbcast.lane.b32.xlu0 %v232, 256
    %v235 = vpop.permute.xlu0 %234
    %v236 = vlaneseq
    %v237 = vshrl.u32 %v236, 7
    %v238 = vsub.s32 1, %v237
    %v239 = vrot.slane %v74, %v238
    %241 = vbcast.lane.b32.xlu0 %v239, 256
    %v242 = vpop.permute.xlu0 %241
    %v243 = vlaneseq
    %v244 = vshrl.u32 %v243, 7
    %v245 = vsub.s32 2, %v244
    %v246 = vrot.slane %v74, %v245
    %248 = vbcast.lane.b32.xlu0 %v246, 256
    %v249 = vpop.permute.xlu0 %248
    %v250 = vlaneseq
    %v251 = vshrl.u32 %v250, 7
    %v252 = vsub.s32 3, %v251
    %v253 = vrot.slane %v74, %v252
    %255 = vbcast.lane.b32.xlu0 %v253, 256
    %v256 = vpop.permute.xlu0 %255
    %v257 = vlaneseq
    %v258 = vshrl.u32 %v257, 7
    %v259 = vsub.s32 4, %v258
    %v260 = vrot.slane %v74, %v259
    %262 = vbcast.lane.b32.xlu0 %v260, 256
    %v263 = vpop.permute.xlu0 %262
    %v264 = vlaneseq
    %v265 = vshrl.u32 %v264, 7
    %v266 = vsub.s32 5, %v265
    %v267 = vrot.slane %v74, %v266
    %269 = vbcast.lane.b32.xlu0 %v267, 256
    %v270 = vpop.permute.xlu0 %269
    %v271 = vlaneseq
    %v272 = vshrl.u32 %v271, 7
    %v273 = vsub.s32 6, %v272
    %v274 = vrot.slane %v74, %v273
    %276 = vbcast.lane.b32.xlu0 %v274, 256
    %v277 = vpop.permute.xlu0 %276
    %v278 = vlaneseq
    %v279 = vshrl.u32 %v278, 7
    %v280 = vsub.s32 7, %v279
    %v281 = vrot.slane %v74, %v280
    %283 = vbcast.lane.b32.xlu0 %v281, 256
    %v284 = vpop.permute.xlu0 %283
    %vm285 = vcmp.eq.s32.totalorder %v235, %v76
    %vm286 = vcmp.eq.s32.totalorder %v242, %v76
    %vm287 = vcmp.eq.s32.totalorder %v249, %v76
    %vm288 = vcmp.eq.s32.totalorder %v256, %v76
    %vm289 = vcmp.eq.s32.totalorder %v263, %v76
    %vm290 = vcmp.eq.s32.totalorder %v270, %v76
    %vm291 = vcmp.eq.s32.totalorder %v277, %v76
    %vm292 = vcmp.eq.s32.totalorder %v284, %v76
    %v293 = vsel %vm285, 1, 0
    %v294 = vsel %vm286, 1, 0
    %v295 = vsel %vm287, 1, 0
    %v296 = vsel %vm288, 1, 0
    %v297 = vsel %vm289, 1, 0
    %v298 = vsel %vm290, 1, 0
    %v299 = vsel %vm291, 1, 0
    %v300 = vsel %vm292, 1, 0
    %v301 = vcvt.s32.f32 %v293
    %v302 = vcvt.s32.f32 %v294
    %v303 = vcvt.s32.f32 %v295
    %v304 = vcvt.s32.f32 %v296
    %v305 = vcvt.s32.f32 %v297
    %v306 = vcvt.s32.f32 %v298
    %v307 = vcvt.s32.f32 %v299
    %v308 = vcvt.s32.f32 %v300
    %v309 = vpack.c.bf16 %v301, %v301
    %v310 = vpack.c.bf16 %v302, %v302
    %v311 = vpack.c.bf16 %v303, %v303
    %v312 = vpack.c.bf16 %v304, %v304
    %v313 = vpack.c.bf16 %v305, %v305
    %v314 = vpack.c.bf16 %v306, %v306
    %v315 = vpack.c.bf16 %v307, %v307
    %v316 = vpack.c.bf16 %v308, %v308
    %v317 = vunpack.c.l.bf16 %v309
    %v318 = vunpack.c.l.bf16 %v310
    %v319 = vunpack.c.l.bf16 %v311
    %v320 = vunpack.c.l.bf16 %v312
    %v321 = vunpack.c.l.bf16 %v313
    %v322 = vunpack.c.l.bf16 %v314
    %v323 = vunpack.c.l.bf16 %v315
    %v324 = vunpack.c.l.bf16 %v316
    %v325 = vrot.slane %v317, 4
    %v326 = vadd.f32 %v317, %v325
    %v327 = vrot.slane %v326, 2
    %v328 = vadd.f32 %v326, %v327
    %v329 = vrot.slane %v328, 1
    %v330 = vadd.f32 %v328, %v329
    %v331 = vrot.slane %v318, 4
    %v332 = vadd.f32 %v318, %v331
    %v333 = vrot.slane %v332, 2
    %v334 = vadd.f32 %v332, %v333
    %v335 = vrot.slane %v334, 1
    %v336 = vadd.f32 %v334, %v335
    %v337 = vrot.slane %v319, 4
    %v338 = vadd.f32 %v319, %v337
    %v339 = vrot.slane %v338, 2
    %v340 = vadd.f32 %v338, %v339
    %v341 = vrot.slane %v340, 1
    %v342 = vadd.f32 %v340, %v341
    %v343 = vrot.slane %v320, 4
    %v344 = vadd.f32 %v320, %v343
    %v345 = vrot.slane %v344, 2
    %v346 = vadd.f32 %v344, %v345
    %v347 = vrot.slane %v346, 1
    %v348 = vadd.f32 %v346, %v347
    %v349 = vrot.slane %v321, 4
    %v350 = vadd.f32 %v321, %v349
    %v351 = vrot.slane %v350, 2
    %v352 = vadd.f32 %v350, %v351
    %v353 = vrot.slane %v352, 1
    %v354 = vadd.f32 %v352, %v353
    %v355 = vrot.slane %v322, 4
    %v356 = vadd.f32 %v322, %v355
    %v357 = vrot.slane %v356, 2
    %v358 = vadd.f32 %v356, %v357
    %v359 = vrot.slane %v358, 1
    %v360 = vadd.f32 %v358, %v359
    %v361 = vrot.slane %v323, 4
    %v362 = vadd.f32 %v323, %v361
    %v363 = vrot.slane %v362, 2
    %v364 = vadd.f32 %v362, %v363
    %v365 = vrot.slane %v364, 1
    %v366 = vadd.f32 %v364, %v365
    %v367 = vrot.slane %v324, 4
    %v368 = vadd.f32 %v324, %v367
    %v369 = vrot.slane %v368, 2
    %v370 = vadd.f32 %v368, %v369
    %v371 = vrot.slane %v370, 1
    %v372 = vadd.f32 %v370, %v371
    %v373 = vpack.c.bf16 %v330, %v330
    %v374 = vpack.c.bf16 %v336, %v336
    %v375 = vpack.c.bf16 %v342, %v342
    %v376 = vpack.c.bf16 %v348, %v348
    %v377 = vpack.c.bf16 %v354, %v354
    %v378 = vpack.c.bf16 %v360, %v360
    %v379 = vpack.c.bf16 %v366, %v366
    %v380 = vpack.c.bf16 %v372, %v372
    %v389 = vunpack.c.l.b16 %v221
    %v390 = vunpack.c.l.b16 %v222
    %v391 = vunpack.c.l.b16 %v223
    %v392 = vunpack.c.l.b16 %v224
    %v393 = vunpack.c.l.b16 %v225
    %v394 = vunpack.c.l.b16 %v226
    %v395 = vunpack.c.l.b16 %v227
    %v396 = vunpack.c.l.b16 %v228
    %vm397 = vcmask 1041409
    %v398 = vsel %vm397, %v390, %v389
    %vm399 = vcmask 1042434
    %v400 = vsel %vm399, %v391, %v398
    %vm401 = vcmask 1043459
    %v402 = vsel %vm401, %v392, %v400
    %vm403 = vcmask 1044484
    %v404 = vsel %vm403, %v393, %v402
    %vm405 = vcmask 1045509
    %v406 = vsel %vm405, %v394, %v404
    %vm407 = vcmask 1046534
    %v408 = vsel %vm407, %v395, %v406
    %vm409 = vcmask 1047559
    %v410 = vsel %vm409, %v396, %v408
    %v411 = vpack.c.b16 %v410, %v410
    %v421 = vunpack.c.l.b16 %v373
    %v422 = vunpack.c.l.b16 %v374
    %v423 = vunpack.c.l.b16 %v375
    %v424 = vunpack.c.l.b16 %v376
    %v425 = vunpack.c.l.b16 %v377
    %v426 = vunpack.c.l.b16 %v378
    %v427 = vunpack.c.l.b16 %v379
    %v428 = vunpack.c.l.b16 %v380
    %v429 = vsel %vm397, %v422, %v421
    %v430 = vsel %vm399, %v423, %v429
    %v431 = vsel %vm401, %v424, %v430
    %v432 = vsel %vm403, %v425, %v431
    %v433 = vsel %vm405, %v426, %v432
    %v434 = vsel %vm407, %v427, %v433
    %v435 = vsel %vm409, %v428, %v434
    %v436 = vpack.c.b16 %v435, %v435
    %v438 = vld [vmem:[#allocation7] sm:$0xf]
    %v439 = vld [vmem:[#allocation7 + $0x4] sm:$0xf]
    %v440 = vld [vmem:[#allocation7 + $0x8] sm:$0xf]
    %v441 = vld [vmem:[#allocation7 + $0xc] sm:$0xf]
    %v442 = vld [vmem:[#allocation7 + $0x10] sm:$0xf]
    %v443 = vld [vmem:[#allocation7 + $0x14] sm:$0xf]
    %v444 = vld [vmem:[#allocation7 + $0x18] sm:$0xf]
    %v445 = vld [vmem:[#allocation7 + $0x1c] sm:$0xf]
    %v446 = vld [vmem:[#allocation7 + $0x20] sm:$0xf]
    %v447 = vld [vmem:[#allocation7 + $0x24] sm:$0xf]
    %v448 = vld [vmem:[#allocation7 + $0x28] sm:$0xf]
    %v449 = vld [vmem:[#allocation7 + $0x2c] sm:$0xf]
    %v450 = vld [vmem:[#allocation7 + $0x30] sm:$0xf]
    %v451 = vld [vmem:[#allocation7 + $0x34] sm:$0xf]
    %v452 = vld [vmem:[#allocation7 + $0x38] sm:$0xf]
    %v453 = vld [vmem:[#allocation7 + $0x3c] sm:$0xf]
    %v454 = vld [vmem:[#allocation7 + $0x40] sm:$0xf]
    %v455 = vld [vmem:[#allocation7 + $0x44] sm:$0xf]
    %v456 = vld [vmem:[#allocation7 + $0x48] sm:$0xf]
    %v457 = vld [vmem:[#allocation7 + $0x4c] sm:$0xf]
    %v458 = vld [vmem:[#allocation7 + $0x50] sm:$0xf]
    %v459 = vld [vmem:[#allocation7 + $0x54] sm:$0xf]
    %v460 = vld [vmem:[#allocation7 + $0x58] sm:$0xf]
    %v461 = vld [vmem:[#allocation7 + $0x5c] sm:$0xf]
    %v462 = vld [vmem:[#allocation7 + $0x60] sm:$0xf]
    %v463 = vld [vmem:[#allocation7 + $0x64] sm:$0xf]
    %v464 = vld [vmem:[#allocation7 + $0x68] sm:$0xf]
    %v465 = vld [vmem:[#allocation7 + $0x6c] sm:$0xf]
    %v466 = vld [vmem:[#allocation7 + $0x70] sm:$0xf]
    %v467 = vld [vmem:[#allocation7 + $0x74] sm:$0xf]
    %v468 = vld [vmem:[#allocation7 + $0x78] sm:$0xf]
    %v469 = vld [vmem:[#allocation7 + $0x7c] sm:$0xf]
    %v502 = vunpack.c.l.b16 %v438
    %v503 = vunpack.c.l.b16 %v439
    %v504 = vunpack.c.l.b16 %v440
    %v505 = vunpack.c.l.b16 %v441
    %v506 = vunpack.c.l.b16 %v442
    %v507 = vunpack.c.l.b16 %v443
    %v508 = vunpack.c.l.b16 %v444
    %v509 = vunpack.c.l.b16 %v445
    %v510 = vunpack.c.l.b16 %v446
    %v511 = vunpack.c.l.b16 %v447
    %v512 = vunpack.c.l.b16 %v448
    %v513 = vunpack.c.l.b16 %v449
    %v514 = vunpack.c.l.b16 %v450
    %v515 = vunpack.c.l.b16 %v451
    %v516 = vunpack.c.l.b16 %v452
    %v517 = vunpack.c.l.b16 %v453
    %v518 = vunpack.c.l.b16 %v454
    %v519 = vunpack.c.l.b16 %v455
    %v520 = vunpack.c.l.b16 %v456
    %v521 = vunpack.c.l.b16 %v457
    %v522 = vunpack.c.l.b16 %v458
    %v523 = vunpack.c.l.b16 %v459
    %v524 = vunpack.c.l.b16 %v460
    %v525 = vunpack.c.l.b16 %v461
    %v526 = vunpack.c.l.b16 %v462
    %v527 = vunpack.c.l.b16 %v463
    %v528 = vunpack.c.l.b16 %v464
    %v529 = vunpack.c.l.b16 %v465
    %v530 = vunpack.c.l.b16 %v466
    %v531 = vunpack.c.l.b16 %v467
    %v532 = vunpack.c.l.b16 %v468
    %v533 = vunpack.c.l.b16 %v469
    %v534 = vpack.c.b16 %v503, %v502
    %v535 = vpack.c.b16 %v505, %v504
    %v536 = vpack.c.b16 %v507, %v506
    %v537 = vpack.c.b16 %v509, %v508
    %v538 = vpack.c.b16 %v511, %v510
    %v539 = vpack.c.b16 %v513, %v512
    %v540 = vpack.c.b16 %v515, %v514
    %v541 = vpack.c.b16 %v517, %v516
    %v542 = vpack.c.b16 %v519, %v518
    %v543 = vpack.c.b16 %v521, %v520
    %v544 = vpack.c.b16 %v523, %v522
    %v545 = vpack.c.b16 %v525, %v524
    %v546 = vpack.c.b16 %v527, %v526
    %v547 = vpack.c.b16 %v529, %v528
    %v548 = vpack.c.b16 %v531, %v530
    %v549 = vpack.c.b16 %v533, %v532
    %566 = vmatprep.subr.bf16.mxu0 0
    %567 = vmatpush1.bf16.msra.mxu0 %v541
    %568 = vmatprep.subr.bf16.mxu0 0
    %569 = vmatpush1.bf16.msra.mxu0 %v540
    %570 = vmatprep.subr.bf16.mxu0 0
    %571 = vmatpush1.bf16.msra.mxu0 %v539
    %572 = vmatprep.subr.bf16.mxu0 0
    %573 = vmatpush1.bf16.msra.mxu0 %v538
    %574 = vmatprep.subr.bf16.mxu0 0
    %575 = vmatpush1.bf16.msra.mxu0 %v537
    %576 = vmatprep.subr.bf16.mxu0 0
    %577 = vmatpush1.bf16.msra.mxu0 %v536
    %578 = vmatprep.subr.bf16.mxu0 0
    %579 = vmatpush1.bf16.msra.mxu0 %v535
    %580 = vmatprep.subr.bf16.mxu0 0
    %581 = vmatpush1.bf16.msra.mxu0 %v534
    %582 = vmatprep.subr.bf16.mxu0 0
    %583 = vmatpush2.bf16.msra.mxu0 %v549
    %584 = vmatprep.subr.bf16.mxu0 0
    %585 = vmatpush2.bf16.msra.mxu0 %v548
    %586 = vmatprep.subr.bf16.mxu0 0
    %587 = vmatpush2.bf16.msra.mxu0 %v547
    %588 = vmatprep.subr.bf16.mxu0 0
    %589 = vmatpush2.bf16.msra.mxu0 %v546
    %590 = vmatprep.subr.bf16.mxu0 0
    %591 = vmatpush2.bf16.msra.mxu0 %v545
    %592 = vmatprep.subr.bf16.mxu0 0
    %593 = vmatpush2.bf16.msra.mxu0 %v544
    %594 = vmatprep.subr.bf16.mxu0 0
    %595 = vmatpush2.bf16.msra.mxu0 %v543
    %596 = vmatprep.subr.bf16.mxu0 0
    %597 = vmatpush2.bf16.msra.mxu0 %v542
    %598 = vmatprep.mubr.bf16.mxu0 %v436
    %599 = vmatmul.mubr.bf16.gmra.mxu0 %v411
    %v600 = vpop.f32.mrf.mxu0
    %v601 = vadd.f32 0.0, %v600
    %v602 = vpop.f32.mrf.mxu0
    %v603 = vpop.f32.mrf.mxu0
    %v604 = vpop.f32.mrf.mxu0
    %605 = vdwg.mxu0
    %vm606 = vcmp.ne.s32.totalorder %v73, 0
    %v607 = vsel %vm606, 1, 0
    %v608 = vcvt.s32.f32 %v607
    %vm609 = vcmask 64512
    %v610 = vsel %vm609, %v608, 0.0
    %611 = vadd.xlane.f32.xlu0 %v610
    %v612 = vpop.xlane.xlu0 %611
    %v613 = vmax.f32 %v612, 1e-09
    %vm614 = vcmp.ne.s32.totalorder %v74, 0
    %v615 = vsel %vm614, 1, 0
    %v616 = vcvt.s32.f32 %v615
    %v617 = vsel %vm609, %v616, 0.0
    %618 = vadd.xlane.f32.xlu0 %v617
    %v619 = vpop.xlane.xlu0 %618
    %v620 = vmax.f32 %v619, 1e-09
    %vm621 = vcmp.lt.s32.totalorder %v76, 64
    %v622 = vrcp.pop %v613
    %v623 = vmul.f32 1.0, %v622
    %v624 = vrcp.pop %v620
    %v625 = vmul.f32 1.0, %v624
    %v626 = vsel %vm621, 1, 0
    %vm627 = vcmp.eq.s32.totalorder %v626, 1
    %v628 = vsel %vm627, %v623, %v625
    %v629 = vmul.f32 %v601, %v628
    %v630 = vpack.c.bf16 %v629, %v629
    %v631 = vld [vmem:[#allocation8] sm:$0xf]
    %v632 = vld [vmem:[#allocation8 + $0x4] sm:$0xf]
    %v633 = vld [vmem:[#allocation8 + $0x8] sm:$0xf]
    %v634 = vld [vmem:[#allocation8 + $0xc] sm:$0xf]
    %v635 = vld [vmem:[#allocation8 + $0x10] sm:$0xf]
    %v636 = vld [vmem:[#allocation8 + $0x14] sm:$0xf]
    %v637 = vld [vmem:[#allocation8 + $0x18] sm:$0xf]
    %v638 = vld [vmem:[#allocation8 + $0x1c] sm:$0xf]
    %v639 = vld [vmem:[#allocation8 + $0x20] sm:$0xf]
    %v640 = vld [vmem:[#allocation8 + $0x24] sm:$0xf]
    %v641 = vld [vmem:[#allocation8 + $0x28] sm:$0xf]
    %v642 = vld [vmem:[#allocation8 + $0x2c] sm:$0xf]
    %v643 = vld [vmem:[#allocation8 + $0x30] sm:$0xf]
    %v644 = vld [vmem:[#allocation8 + $0x34] sm:$0xf]
    %v645 = vld [vmem:[#allocation8 + $0x38] sm:$0xf]
    %v646 = vld [vmem:[#allocation8 + $0x3c] sm:$0xf]
    %v647 = vld [vmem:[%s4] sm:$0x1]
    %v649 = vlaneseq
    %v650 = vshrl.u32 %v649, 7
    %v651 = vsub.s32 0, %v650
    %v652 = vrot.slane %v647, %v651
    %v670 = vunpack.c.l.b16 %v631
    %v671 = vunpack.c.l.b16 %v632
    %v672 = vunpack.c.l.b16 %v633
    %v673 = vunpack.c.l.b16 %v634
    %v674 = vunpack.c.l.b16 %v635
    %v675 = vunpack.c.l.b16 %v636
    %v676 = vunpack.c.l.b16 %v637
    %v677 = vunpack.c.l.b16 %v638
    %v678 = vunpack.c.l.b16 %v639
    %v679 = vunpack.c.l.b16 %v640
    %v680 = vunpack.c.l.b16 %v641
    %v681 = vunpack.c.l.b16 %v642
    %v682 = vunpack.c.l.b16 %v643
    %v683 = vunpack.c.l.b16 %v644
    %v684 = vunpack.c.l.b16 %v645
    %v685 = vunpack.c.l.b16 %v646
    %v686 = vpack.c.b16 %v671, %v670
    %v687 = vpack.c.b16 %v673, %v672
    %v688 = vpack.c.b16 %v675, %v674
    %v689 = vpack.c.b16 %v677, %v676
    %v690 = vpack.c.b16 %v679, %v678
    %v691 = vpack.c.b16 %v681, %v680
    %v692 = vpack.c.b16 %v683, %v682
    %v693 = vpack.c.b16 %v685, %v684
    %702 = vmatprep.subr.bf16.mxu0 0
    %703 = vmatpush1.bf16.msra.mxu0 %v693
    %704 = vmatprep.subr.bf16.mxu0 0
    %705 = vmatpush1.bf16.msra.mxu0 %v692
    %706 = vmatprep.subr.bf16.mxu0 0
    %707 = vmatpush1.bf16.msra.mxu0 %v691
    %708 = vmatprep.subr.bf16.mxu0 0
    %709 = vmatpush1.bf16.msra.mxu0 %v690
    %710 = vmatprep.subr.bf16.mxu0 0
    %711 = vmatpush1.bf16.msra.mxu0 %v689
    %712 = vmatprep.subr.bf16.mxu0 0
    %713 = vmatpush1.bf16.msra.mxu0 %v688
    %714 = vmatprep.subr.bf16.mxu0 0
    %715 = vmatpush1.bf16.msra.mxu0 %v687
    %716 = vmatprep.subr.bf16.mxu0 0
    %717 = vmatpush1.bf16.msra.mxu0 %v686
    %718 = vmatprep.subr.bf16.mxu0 0
    %719 = vmatpush2.bf16.msra.mxu0 0
    %720 = vmatprep.subr.bf16.mxu0 0
    %721 = vmatpush2.bf16.msra.mxu0 0
    %722 = vmatprep.subr.bf16.mxu0 0
    %723 = vmatpush2.bf16.msra.mxu0 0
    %724 = vmatprep.subr.bf16.mxu0 0
    %725 = vmatpush2.bf16.msra.mxu0 0
    %726 = vmatprep.subr.bf16.mxu0 0
    %727 = vmatpush2.bf16.msra.mxu0 0
    %728 = vmatprep.subr.bf16.mxu0 0
    %729 = vmatpush2.bf16.msra.mxu0 0
    %730 = vmatprep.subr.bf16.mxu0 0
    %731 = vmatpush2.bf16.msra.mxu0 0
    %732 = vmatprep.subr.bf16.mxu0 0
    %733 = vmatpush2.bf16.msra.mxu0 0
    %734 = vmatprep.mubr.bf16.mxu0 0
    %735 = vmatmul.mubr.bf16.gmra.mxu0 %v630
    %v736 = vpop.f32.mrf.mxu0
    %v737 = vadd.f32 %v652, %v736
    %v738 = vpop.f32.mrf.mxu0
    %v739 = vpop.f32.mrf.mxu0
    %v740 = vpop.f32.mrf.mxu0
    %741 = vdwg.mxu0
    %v742 = vmul.f32 %v737, %v737
    %v743 = vsel %vm627, %v742, 0.0
    %744 = vadd.xlane.f32.xlu0 %v743
    %v745 = vpop.xlane.xlu0 %744
    %v746 = vsel %vm627, 0.0, %v742
    %747 = vadd.xlane.f32.xlu0 %v746
    %v748 = vpop.xlane.xlu0 %747
    %v749 = vmax.f32 %v745, 1e-24
    %v750 = vrsqrt.pop %v749
    %v751 = vmax.f32 %v748, 1e-24
    %v752 = vrsqrt.pop %v751
    %v753 = vsel %vm627, %v750, %v752
    %v754 = vmul.f32 %v737, %v753
    %755 = vst [vmem:[#allocation10] sm:$0xff] %v754
    // Predicated region
    $region38: #{tpu_custom_call.1} parent=1 // pred_check
      _
    $region39: #{tpu_custom_call.1} parent=1 // pred_check_branch
      %757 = sbr.rel (0) target = $region41
    $region40: #{tpu_custom_call.1} parent=1 // pred_region
      %s759 = ssub.s32 128, 128
      %760 = vsyncadd [#allocation4], %s759
      %s762 = sshll.u32 [#allocation10], 4
      %s763 = int_to_ptr.vmem [resolvable:$true] %s762
      %765 = dma.vmem_to_hbm [thread:$0]  %s763, 128, %s5, [#allocation4]
    $region41: #{tpu_custom_call.1} parent=1 // pred_fallthru
      _
    // Predicated region
    $region42: #{tpu_custom_call.1} parent=1 // pred_check
      _
    $region43: #{tpu_custom_call.1} parent=1 // pred_check_branch
      %767 = sbr.rel (0) target = $region45
    $region44: #{tpu_custom_call.1} parent=1 // pred_region
      %768 = dma.done [#allocation4], 128
    $region45: #{tpu_custom_call.1} parent=1 // pred_fallthru
      _
    %769 = vsyncpa [#allocation3], 1
    %770 = vsyncpa [#allocation6], 1
    %771 = vsyncpa [#allocation9], 1
    %772 = vsyncpa [#allocation4], 1

</llo_original>
